<compile_context>
chip_gen: v6e
topology: v6e:2x2x1
jax: 0.10.0
libtpu: 0.0.40
codegen_flags: <defaults>
</compile_context>

<pallas_src>
import jax
import jax.numpy as jnp
from jax.experimental import pallas as pl
from jax.experimental.pallas import tpu as pltpu


def _round_up(x, m):
    return (x + m - 1) // m * m


def _film_kernel_noign(x_ref, w_ref, prm_ref, out_ref):
    """No ignore_conditions: out = sin(freq * (x @ W^T) + phase_eff).

    x_ref   : (1, TN, D)
    w_ref   : (H_pad, D)     -- native nn.Linear layout, VMEM resident
    prm_ref : (1, 2, H_pad)  -- rows: [freq, phase_eff] (bias folded in)
    out_ref : (1, TN, H_pad)
    """
    h = jax.lax.dot_general(
        x_ref[0], w_ref[...],
        dimension_numbers=(((1,), (1,)), ((), ())),
        preferred_element_type=jnp.float32)          # (TN, H_pad)
    f = prm_ref[0, 0:1, :]                           # (1, H_pad)
    p = prm_ref[0, 1:2, :]                           # (1, H_pad)
    out_ref[0] = jnp.sin(f * h + p).astype(out_ref.dtype)


def _film_kernel_ign(mask_ref, x_ref, w_ref, prm_ref, out_ref):
    """With ignore_conditions: per-position blend via a float mask.

    mask_ref : (TN, 1) f32    -- 1.0 where this seq position uses the ignore row
    prm_ref  : (1, 4, H_pad)  -- rows: [freq, phase_eff, freq_diff, phase_diff]
                                  (diff = ignore_row - cond_row, bias folded in)
    """
    h = jax.lax.dot_general(
        x_ref[0], w_ref[...],
        dimension_numbers=(((1,), (1,)), ((), ())),
        preferred_element_type=jnp.float32)          # (TN, H_pad)
    m = mask_ref[...]                                # (TN, 1) in {0.0, 1.0}
    f = prm_ref[0, 0:1, :] + m * prm_ref[0, 2:3, :]  # (TN, H_pad)
    p = prm_ref[0, 1:2, :] + m * prm_ref[0, 3:4, :]  # (TN, H_pad)
    out_ref[0] = jnp.sin(f * h + p).astype(out_ref.dtype)


def film_layer(x, freq, phase_shift, weight, bias, ignore_conditions=None,
               *, block_n=512):
    """Pallas FiLMLayer forward.

    x:            (B, N, D) float32
    freq, phase:  (B, H) if ignore_conditions is None, else (B+1, H)
    weight:       (H, D)  (PyTorch nn.Linear layout)
    bias:         (H,)
    ignore_conditions: optional 1-D int array of seq indices in [0, N)
    returns:      (B, N, H)
    """
    B, N, D = x.shape
    H = weight.shape[0]
    has_ignore = ignore_conditions is not None

    # --- split conditional / ignore rows (matches torch freq[:-1] / freq[-1:]) ---
    if has_ignore:
        cond_freq, cond_phase = freq[:-1], phase_shift[:-1]
        ign_freq, ign_phase = freq[-1:], phase_shift[-1:]
    else:
        cond_freq, cond_phase = freq, phase_shift
    assert cond_freq.shape == (B, H) and cond_phase.shape == (B, H)

    # --- fold the Linear bias into the phase: sin(f*(xW+b)+p) == sin(f*xW + (f*b+p)) ---
    cond_phase_eff = cond_freq * bias[None, :] + cond_phase

    # --- tiling: lane-dense H (multiple of 128), VMEM-budgeted seq tile TN ---
    H_pad = _round_up(H, 128)
    TN = min(_round_up(block_n, 8), _round_up(N, 8))

    def tile_bytes(tn):
        # double-buffered x + out, (conservatively) doubled weight, small operands
        return 4 * (2 * tn * D + 2 * tn * H_pad + 2 * H_pad * D
                    + 8 * H_pad + 4 * tn)

    while TN > 8 and tile_bytes(TN) > (36 << 20):
        TN = max(8, _round_up(TN // 2, 8))
    N_pad = _round_up(N, TN)

    # --- pad operands (zeros in padded rows/cols; sliced off at the end) ---
    x_p = jnp.pad(x, ((0, 0), (0, N_pad - N), (0, 0))) if N_pad != N else x
    pad_h = H_pad - H
    w_p = jnp.pad(weight, ((0, pad_h), (0, 0))) if pad_h else weight

    def padh(a):
        return jnp.pad(a, ((0, 0), (0, pad_h))) if pad_h else a

    if has_ignore:
        ign_phase_eff = ign_freq * bias[None, :] + ign_phase
        # One packed parameter tensor per batch: [freq, phase_eff, dfreq, dphase].
        params = jnp.stack(
            [padh(cond_freq),
             padh(cond_phase_eff),
             padh(jnp.broadcast_to(ign_freq, (B, H)) - cond_freq),
             padh(jnp.broadcast_to(ign_phase_eff, (B, H)) - cond_phase_eff)],
            axis=1)                                           # (B, 4, H_pad)
        mask1d = jnp.zeros((N_pad,), jnp.float32).at[ignore_conditions].set(1.0)
        mask = mask1d.reshape(N_pad, 1)
    else:
        params = jnp.stack([padh(cond_freq), padh(cond_phase_eff)],
                           axis=1)                            # (B, 2, H_pad)

    R = params.shape[1]
    grid = (B, N_pad // TN)
    vmem_limit = int(min(48 << 20, max(32 << 20, 2 * tile_bytes(TN))))

    common_specs = [
        pl.BlockSpec((1, TN, D), lambda b, n: (b, n, 0)),      # x tile
        pl.BlockSpec((H_pad, D), lambda b, n: (0, 0)),         # weight (resident)
        pl.BlockSpec((1, R, H_pad), lambda b, n: (b, 0, 0)),   # packed FiLM params
    ]
    out_spec = pl.BlockSpec((1, TN, H_pad), lambda b, n: (b, n, 0))

    if has_ignore:
        in_specs = [pl.BlockSpec((TN, 1), lambda b, n: (n, 0))] + common_specs
        kernel = _film_kernel_ign
        operands = (mask, x_p, w_p, params)
    else:
        in_specs = common_specs
        kernel = _film_kernel_noign
        operands = (x_p, w_p, params)

    grid_spec = pltpu.PrefetchScalarGridSpec(
        num_scalar_prefetch=0,
        grid=grid,
        in_specs=in_specs,
        out_specs=out_spec,
    )

    out = pl.pallas_call(
        kernel,
        out_shape=jax.ShapeDtypeStruct((B, N_pad, H_pad), x.dtype),
        grid_spec=grid_spec,
        compiler_params=pltpu.CompilerParams(
            dimension_semantics=("parallel", "parallel"),
            vmem_limit_bytes=vmem_limit),
    )(*operands)

    return out[:, :N, :H]


def film_layer_ref(x, freq, phase_shift, weight, bias, ignore_conditions=None):
    """Pure-JAX reference mirroring the PyTorch module."""
    h = jnp.einsum("bnd,hd->bnh", x, weight) + bias
    if ignore_conditions is not None:
        cond_freq = jnp.broadcast_to(freq[:-1, None, :], h.shape)
        cond_phase = jnp.broadcast_to(phase_shift[:-1, None, :], h.shape)
        ign_freq = jnp.broadcast_to(freq[-1:, None, :], h.shape)
        ign_phase = jnp.broadcast_to(phase_shift[-1:, None, :], h.shape)
        cond_freq = cond_freq.at[:, ignore_conditions].set(
            ign_freq[:, ignore_conditions])
        cond_phase = cond_phase.at[:, ignore_conditions].set(
            ign_phase[:, ignore_conditions])
        freq_e, phase_e = cond_freq, cond_phase
    else:
        freq_e = jnp.broadcast_to(freq[:, None, :], h.shape)
        phase_e = jnp.broadcast_to(phase_shift[:, None, :], h.shape)
    return jnp.sin(freq_e * h + phase_e)


if __name__ == "__main__":
    key = jax.random.PRNGKey(0)
    B, N, D, H = 2, 8, 32, 32   # batch, seq, input_dim, hidden_dim

    k_x, k_f, k_p, k_w, k_b = jax.random.split(key, 5)
    x = jax.random.normal(k_x, (B, N, D), jnp.float32)
    weight = jax.random.normal(k_w, (H, D), jnp.float32) * (1.0 / jnp.sqrt(D))
    bias = jax.random.normal(k_b, (H,), jnp.float32) * 0.01

    # --- main path (ignore_conditions=None): freq/phase are (B, H) ---
    freq = jax.random.normal(k_f, (B, H), jnp.float32) * 3.0 + 15.0
    phase = jax.random.normal(k_p, (B, H), jnp.float32)

    out = jax.block_until_ready(film_layer(x, freq, phase, weight, bias))
    ref = film_layer_ref(x, freq, phase, weight, bias)
    assert out.shape == (B, N, H)
    assert jnp.allclose(out, ref, atol=1e-4, rtol=1e-5), "mismatch (main path)"

    # --- ignore_conditions path: freq/phase are (B+1, H) ---
    freq2 = jax.random.normal(k_f, (B + 1, H), jnp.float32) * 3.0 + 15.0
    phase2 = jax.random.normal(k_p, (B + 1, H), jnp.float32)
    ignore_idx = jnp.array([1, 5], jnp.int32)

    out2 = jax.block_until_ready(
        film_layer(x, freq2, phase2, weight, bias, ignore_conditions=ignore_idx))
    ref2 = film_layer_ref(x, freq2, phase2, weight, bias,
                          ignore_conditions=ignore_idx)
    assert jnp.allclose(out2, ref2, atol=1e-4, rtol=1e-5), "mismatch (ignore path)"

    # --- odd shapes to exercise N-tiling and H/N padding paths ---
    B3, N3, D3, H3 = 3, 100, 48, 96
    k1, k2, k3, k4, k5 = jax.random.split(jax.random.PRNGKey(1), 5)
    x3 = jax.random.normal(k1, (B3, N3, D3), jnp.float32)
    w3 = jax.random.normal(k4, (H3, D3), jnp.float32) * (1.0 / jnp.sqrt(D3))
    b3 = jax.random.normal(k5, (H3,), jnp.float32) * 0.01
    f3 = jax.random.normal(k2, (B3 + 1, H3), jnp.float32) * 3.0 + 15.0
    p3 = jax.random.normal(k3, (B3 + 1, H3), jnp.float32)
    idx3 = jnp.array([0, 7, 33, 99], jnp.int32)

    out3 = jax.block_until_ready(
        film_layer(x3, f3, p3, w3, b3, ignore_conditions=idx3))
    ref3 = film_layer_ref(x3, f3, p3, w3, b3, ignore_conditions=idx3)
    assert out3.shape == (B3, N3, H3)
    assert jnp.allclose(out3, ref3, atol=1e-4, rtol=1e-5), "mismatch (padded path)"

    # no-ignore odd-shape path (exercises the 2-row packed-params kernel)
    out4 = jax.block_until_ready(film_layer(x3, f3[:-1], p3[:-1], w3, b3))
    ref4 = film_layer_ref(x3, f3[:-1], p3[:-1], w3, b3)
    assert jnp.allclose(out4, ref4, atol=1e-4, rtol=1e-5), "mismatch (no-ignore padded)"

    print("KERNEL_OK")
</pallas_src>

<mosaic_0001>
module attributes {stable_mosaic.version = 11 : i64} {
  func.func @_film_kernel_noign(%arg0: i32, %arg1: i32, %arg2: memref<1x8x32xf32, #tpu.memory_space<vmem>>, %arg3: memref<128x32xf32, #tpu.memory_space<vmem>>, %arg4: memref<1x2x128xf32, #tpu.memory_space<vmem>>, %arg5: memref<1x8x128xf32, #tpu.memory_space<vmem>>) attributes {dimension_semantics = [#tpu.dimension_semantics<parallel>, #tpu.dimension_semantics<parallel>], iteration_bounds = array<i64: 2, 1>, scalar_prefetch = 0 : i64, scratch_operands = 0 : i64, tpu.core_type = #tpu.core_type<tc>, window_params = [{transform_indices = @transform_0, window_bounds = array<i64: 1, 8, 32>}, {pipeline_mode = #tpu.pipeline_mode<synchronous>, transform_indices = @transform_1, window_bounds = array<i64: 128, 32>}, {transform_indices = @transform_2, window_bounds = array<i64: 1, 2, 128>}, {transform_indices = @transform_3, window_bounds = array<i64: 1, 8, 128>}]} {
    %c0 = arith.constant 0 : index
    %c0_0 = arith.constant 0 : index
    %c0_1 = arith.constant 0 : index
    %0 = vector.load %arg2[%c0, %c0_0, %c0_1] : memref<1x8x32xf32, #tpu.memory_space<vmem>>, vector<1x8x32xf32>
    %1 = vector.shape_cast %0 : vector<1x8x32xf32> to vector<8x32xf32>
    %c0_2 = arith.constant 0 : index
    %c0_3 = arith.constant 0 : index
    %2 = vector.load %arg3[%c0_2, %c0_3] : memref<128x32xf32, #tpu.memory_space<vmem>>, vector<128x32xf32>
    %cst = arith.constant dense<0.000000e+00> : vector<8x128xf32>
    %3 = tpu.matmul %1, %2, %cst {dimension_numbers = #tpu.dot_dimension_numbers<[1], [1], [0], [0], [0, 0, 1, 0], [], []>} : vector<8x32xf32>, vector<128x32xf32>, vector<8x128xf32> -> vector<8x128xf32>
    %c0_4 = arith.constant 0 : index
    %c0_5 = arith.constant 0 : index
    %c0_6 = arith.constant 0 : index
    %4 = vector.load %arg4[%c0_4, %c0_5, %c0_6] : memref<1x2x128xf32, #tpu.memory_space<vmem>>, vector<1x1x128xf32>
    %5 = vector.shape_cast %4 : vector<1x1x128xf32> to vector<1x128xf32>
    %c0_7 = arith.constant 0 : index
    %c1 = arith.constant 1 : index
    %c0_8 = arith.constant 0 : index
    %6 = vector.load %arg4[%c0_7, %c1, %c0_8] : memref<1x2x128xf32, #tpu.memory_space<vmem>>, vector<1x1x128xf32>
    %7 = vector.shape_cast %6 : vector<1x1x128xf32> to vector<1x128xf32>
    %8 = vector.broadcast %5 : vector<1x128xf32> to vector<8x128xf32>
    %9 = arith.mulf %8, %3 : vector<8x128xf32>
    %10 = vector.broadcast %7 : vector<1x128xf32> to vector<8x128xf32>
    %11 = arith.addf %9, %10 : vector<8x128xf32>
    %12 = math.sin %11 : vector<8x128xf32>
    %c0_9 = arith.constant 0 : index
    %c0_10 = arith.constant 0 : index
    %c0_11 = arith.constant 0 : index
    %13 = vector.load %arg5[%c0_9, %c0_10, %c0_11] : memref<1x8x128xf32, #tpu.memory_space<vmem>>, vector<1x8x128xf32>
    %14 = vector.shape_cast %13 : vector<1x8x128xf32> to vector<8x128xf32>
    %15 = vector.shape_cast %12 : vector<8x128xf32> to vector<1x8x128xf32>
    tpu.vector_store %arg5[%c0_9, %c0_10, %c0_11], %15 {strides = array<i32>} : memref<1x8x128xf32, #tpu.memory_space<vmem>>, vector<1x8x128xf32>,
    return
  }
  func.func @transform_0(%arg0: i32, %arg1: i32) -> (i32, i32, i32) {
    %c0_i32 = arith.constant 0 : i32
    %c0_i32_0 = arith.constant 0 : i32
    return %arg0, %arg1, %c0_i32 : i32, i32, i32
  }
  func.func @transform_1(%arg0: i32, %arg1: i32) -> (i32, i32) {
    %c0_i32 = arith.constant 0 : i32
    %c0_i32_0 = arith.constant 0 : i32
    %c0_i32_1 = arith.constant 0 : i32
    return %c0_i32, %c0_i32_0 : i32, i32
  }
  func.func @transform_2(%arg0: i32, %arg1: i32) -> (i32, i32, i32) {
    %c0_i32 = arith.constant 0 : i32
    %c0_i32_0 = arith.constant 0 : i32
    %c0_i32_1 = arith.constant 0 : i32
    return %arg0, %c0_i32, %c0_i32_0 : i32, i32, i32
  }
  func.func @transform_3(%arg0: i32, %arg1: i32) -> (i32, i32, i32) {
    %c0_i32 = arith.constant 0 : i32
    %c0_i32_0 = arith.constant 0 : i32
    return %arg0, %arg1, %c0_i32 : i32, i32, i32
  }
}

</mosaic_0001>

<llo_original>
// kernel: tpu_custom_call.1
$region0: #{tpu_custom_call.1}
  #allocation0 [shape = 'u32[]', space=smem, size = 0x4, offset = 0x4, fixed_abs, tag = 'smem constant byte address 0x4 - core index']
  #allocation1 [shape = 'u32[144,128]{1,0:T(1,128)}', space=vmem, size = 0x12000, scoped, tag = 'internal scratch']
  %s0 = inlined_call_operand.vmem [shape: f32[2,8,32], index: 0, kind: input, shape index: {}]
  %s1 = inlined_call_operand.vmem [shape: f32[128,32], index: 1, kind: input, shape index: {}]
  %s2 = inlined_call_operand.vmem [shape: f32[2,2,128], index: 2, kind: input, shape index: {}]
  %s3 = inlined_call_operand.hbm [shape: f32[2,8,128], index: 3, kind: output, shape index: {}]
  %s4 = sld [smem:[#allocation0]]
  $region45: #{tpu_custom_call.1} parent=0
    _
  %s6 = ssub.s32 1, %s4
  %s7 = scalar_select 0, %s6, %s4
  $region1: #{tpu_custom_call.1} parent=0
    #allocation2 [shape = 'u8[8192]{0}', space=vmem, size = 0x2000, scoped, tag = 'output window, operand 0']
    #allocation3 [shape = 's32[2]{0}', space=sflag, size = 0x8, scoped, tag = 'scoped memory for tpu_custom_call.1']
    %8 = vsyncpa [#allocation3], 0
    %s9 = scalar_lea.sflag [#allocation3], 1
    %10 = vsyncpa %s9, 0
    loop: start=0, step=1, limit=4
    $region2: #{tpu_custom_call.1} parent=1 // loop_pre_header
      _
    $region3: #{tpu_custom_call.1} parent=1 // loop_header
      %s12 = sphi 0, %s16
      %p13 = scmp.ge.s32.totalorder %s12, 4
      %s19 = sphi 0, %s31
      %s20 = sphi 0, %s27
      %s21 = sphi 0, %s19
      %s22 = sphi 0, %s20
      %s23 = sphi 0, %s21
      %s24 = sphi 0, %s22
      %s36 = sphi 0, %s38
      %s39 = sphi 0, %s36
      %s40 = sphi 0, %s39
      %s56 = sphi 0, %s40
      %s60 = sphi 0, %s60
      %s62 = sphi 0, %s60
      %s63 = sphi 0, %s62
      %s77 = sphi 0, %s63
      %s83 = sphi 0, %s85
      %s86 = sphi 0, %s83
      %s87 = sphi 0, %s86
      %s103 = sphi 0, %s87
      %s111 = sphi 0, %s113
      %s114 = sphi 0, %s111
      %s115 = sphi 0, %s114
      %s131 = sphi 0, %s115
    $region4: #{tpu_custom_call.1} parent=1 // loop_header_branch
      %15 = sbr.rel (%p13) target = $region8
    $region5: #{tpu_custom_call.1} parent=1 // loop_body
      %s17 = ssub.s32 %s12, 1
      %s18 = ssub.s32 %s12, 2
      %s25 = sadd.s32 1, %s20
      %p26 = scmp.ge.s32.totalorder %s25, 1
      %s27 = scalar_select %p26, 0, %s25
      %s28 = sadd.s32 1, %s19
      %s29 = scalar_select %p26, %s28, %s19
      %p30 = scmp.ge.s32.totalorder %s29, 2
      %s31 = scalar_select %p30, 0, %s29
      %s32 = ssub.s32 %s19, %s31
      %s33 = ssub.s32 %s20, %s27
      %s34 = sor.u32 %s32, %s33
      %p35 = scmp.eq.s32.totalorder %s34, 0
      %s37 = sadd.s32 %s36, 1
      %s38 = scalar_select %p35, %s36, %s37
      %p41 = pneg %p35
      %p42 = scmp.eq.s32.totalorder %s12, 1
      %p43 = por %p41, %p42
      %p44 = scmp.ne.s32.totalorder %s36, %s39
      %p45 = scmp.eq.s32.totalorder %s12, 0
      %p46 = por %p44, %p45
      %p47 = scmp.ne.s32.totalorder %s36, %s39
      %p48 = scmp.eq.s32.totalorder %s17, 1
      %p49 = por %p47, %p48
      %p50 = scmp.ne.s32.totalorder %s39, %s40
      %p51 = scmp.eq.s32.totalorder %s17, 0
      %p52 = por %p50, %p51
      %p53 = scmp.ne.s32.totalorder %s39, %s40
      %p54 = scmp.eq.s32.totalorder %s18, 1
      %p55 = por %p53, %p54
      %p57 = scmp.ne.s32.totalorder %s40, %s56
      %p58 = scmp.eq.s32.totalorder %s18, 0
      %p59 = por %p57, %p58
      %s61 = sadd.s32 %s60, 1
      %p64 = scmp.eq.s32.totalorder %s12, 1
      %p65 = scmp.ne.s32.totalorder %s60, %s62
      %p66 = scmp.eq.s32.totalorder %s12, 0
      %p67 = por %p65, %p66
      %p68 = scmp.ne.s32.totalorder %s60, %s62
      %p69 = scmp.eq.s32.totalorder %s17, 1
      %p70 = por %p68, %p69
      %p71 = scmp.ne.s32.totalorder %s62, %s63
      %p72 = scmp.eq.s32.totalorder %s17, 0
      %p73 = por %p71, %p72
      %p74 = scmp.ne.s32.totalorder %s62, %s63
      %p75 = scmp.eq.s32.totalorder %s18, 1
      %p76 = por %p74, %p75
      %p78 = scmp.ne.s32.totalorder %s63, %s77
      %p79 = scmp.eq.s32.totalorder %s18, 0
      %p80 = por %p78, %p79
      %s81 = ssub.s32 %s19, %s31
      %p82 = scmp.eq.s32.totalorder %s81, 0
      %s84 = sadd.s32 %s83, 1
      %s85 = scalar_select %p82, %s83, %s84
      %p88 = pneg %p82
      %p89 = scmp.eq.s32.totalorder %s12, 1
      %p90 = por %p88, %p89
      %p91 = scmp.ne.s32.totalorder %s83, %s86
      %p92 = scmp.eq.s32.totalorder %s12, 0
      %p93 = por %p91, %p92
      %p94 = scmp.ne.s32.totalorder %s83, %s86
      %p95 = scmp.eq.s32.totalorder %s17, 1
      %p96 = por %p94, %p95
      %p97 = scmp.ne.s32.totalorder %s86, %s87
      %p98 = scmp.eq.s32.totalorder %s17, 0
      %p99 = por %p97, %p98
      %p100 = scmp.ne.s32.totalorder %s86, %s87
      %p101 = scmp.eq.s32.totalorder %s18, 1
      %p102 = por %p100, %p101
      %p104 = scmp.ne.s32.totalorder %s87, %s103
      %p105 = scmp.eq.s32.totalorder %s18, 0
      %p106 = por %p104, %p105
      %s107 = ssub.s32 %s19, %s31
      %s108 = ssub.s32 %s20, %s27
      %s109 = sor.u32 %s107, %s108
      %p110 = scmp.eq.s32.totalorder %s109, 0
      %s112 = sadd.s32 %s111, 1
      %s113 = scalar_select %p110, %s111, %s112
      %p116 = pneg %p110
      %p117 = scmp.eq.s32.totalorder %s12, 1
      %p118 = por %p116, %p117
      %p119 = scmp.ne.s32.totalorder %s111, %s114
      %p120 = scmp.eq.s32.totalorder %s12, 0
      %p121 = por %p119, %p120
      %p122 = scmp.ne.s32.totalorder %s111, %s114
      %p123 = scmp.eq.s32.totalorder %s17, 1
      %p124 = por %p122, %p123
      %p125 = scmp.ne.s32.totalorder %s114, %s115
      %p126 = scmp.eq.s32.totalorder %s17, 0
      %p127 = por %p125, %p126
      %p128 = scmp.ne.s32.totalorder %s114, %s115
      %p129 = scmp.eq.s32.totalorder %s18, 1
      %p130 = por %p128, %p129
      %p132 = scmp.ne.s32.totalorder %s115, %s131
      %p133 = scmp.eq.s32.totalorder %s18, 0
      %p134 = por %p132, %p133
      %p135 = scmp.le.s32.totalorder 1, %s12
      %p136 = scmp.lt.s32.totalorder %s12, 3
      %p137 = pnand %p135, %p136
      %p138 = pneg %p137
      // Predicated region
      $region9: #{tpu_custom_call.1} parent=5 // pred_check
        _
      $region10: #{tpu_custom_call.1} parent=5 // pred_check_branch
        %140 = sbr.rel (%p137) target = $region12
      $region11: #{tpu_custom_call.1} parent=5 // pred_region
        %s141 = ssub.s32 %s12, 1
        // Predicated region
        $region13: #{tpu_custom_call.1} parent=11 // pred_check
          %p142 = pneg %p73
        $region14: #{tpu_custom_call.1} parent=11 // pred_check_branch
          %144 = sbr.rel (%p142) target = $region16
        $region15: #{tpu_custom_call.1} parent=11 // pred_region
          _
        $region16: #{tpu_custom_call.1} parent=11 // pred_fallthru
          _
      $region12: #{tpu_custom_call.1} parent=5 // pred_fallthru
        _
      %p145 = scmp.lt.s32.totalorder %s12, 2
      // Predicated region
      $region17: #{tpu_custom_call.1} parent=5 // pred_check
        %p146 = pneg %p145
      $region18: #{tpu_custom_call.1} parent=5 // pred_check_branch
        %148 = sbr.rel (%p146) target = $region20
      $region19: #{tpu_custom_call.1} parent=5 // pred_region
        // Predicated region
        $region21: #{tpu_custom_call.1} parent=19 // pred_check
          %p149 = pneg %p46
        $region22: #{tpu_custom_call.1} parent=19 // pred_check_branch
          %151 = sbr.rel (%p149) target = $region24
        $region23: #{tpu_custom_call.1} parent=19 // pred_region
          %p152 = scmp.lt.s32.totalorder %s19, 1
          %s153 = scalar_select %p152, %s19, 1
          %p154 = scmp.lt.s32.totalorder %s20, 0
          %s155 = scalar_select %p154, %s20, 0
          %s156 = sadd.s32 %s155, %s153
          %s157 = smul.addr %s156, 8
          %s158 = scalar_lea.vmem %s0, %s157
        $region24: #{tpu_custom_call.1} parent=19 // pred_fallthru
          _
        // Predicated region
        $region25: #{tpu_custom_call.1} parent=19 // pred_check
          %p159 = pneg %p93
        $region26: #{tpu_custom_call.1} parent=19 // pred_check_branch
          %161 = sbr.rel (%p159) target = $region28
        $region27: #{tpu_custom_call.1} parent=19 // pred_region
          %p162 = scmp.lt.s32.totalorder %s19, 1
          %s163 = scalar_select %p162, %s19, 1
          %s164 = smul.addr %s163, 2
          %s165 = scalar_lea.vmem %s2, %s164
        $region28: #{tpu_custom_call.1} parent=19 // pred_fallthru
          _
      $region20: #{tpu_custom_call.1} parent=5 // pred_fallthru
        _
      %p166 = scmp.le.s32.totalorder 1, %s12
      %p167 = scmp.lt.s32.totalorder %s12, 3
      %p168 = pnand %p166, %p167
      %p169 = pneg %p168
      // Predicated region
      $region29: #{tpu_custom_call.1} parent=5 // pred_check
        _
      $region30: #{tpu_custom_call.1} parent=5 // pred_check_branch
        %171 = sbr.rel (%p168) target = $region32
      $region31: #{tpu_custom_call.1} parent=5 // pred_region
        %s172 = ssub.s32 %s12, 1
        %p173 = scmp.lt.s32.totalorder %s21, 1
        %s174 = scalar_select %p173, %s21, 1
        %p175 = scmp.lt.s32.totalorder %s22, 0
        %s176 = scalar_select %p175, %s22, 0
        %s177 = sadd.s32 %s176, %s174
        %s178 = smul.addr %s177, 8
        %s179 = scalar_lea.vmem %s0, %s178
        %p180 = pneg %p52
        %p181 = pneg %p49
        %p182 = pneg %p73
        %p183 = pneg %p70
        %p184 = scmp.lt.s32.totalorder %s21, 1
        %s185 = scalar_select %p184, %s21, 1
        %s186 = smul.addr %s185, 2
        %s187 = scalar_lea.vmem %s2, %s186
        %p188 = pneg %p99
        %p189 = pneg %p96
        %p190 = pneg %p127
        %p191 = pneg %p124
        %s192 = sand.u32 %s114, 1
        %s193 = scalar_lea.sflag [#allocation3], %s192
        %s194 = sand.u32 %s114, 1
        %s195 = smul.addr %s194, 8
        %s196 = scalar_lea.vmem [#allocation2], %s195
        %p197 = scmp.lt.s32.totalorder %s21, 1
        %s198 = scalar_select %p197, %s21, 1
        %p199 = scmp.lt.s32.totalorder %s22, 0
        %s200 = scalar_select %p199, %s22, 0
        %s201 = sadd.s32 %s200, %s198
        %s202 = smul.addr %s201, 8
        %s203 = scalar_lea.vmem %s0, %s202
        %p204 = scmp.lt.s32.totalorder %s21, 1
        %s205 = scalar_select %p204, %s21, 1
        %s206 = smul.addr %s205, 2
        %s207 = scalar_lea.vmem %s2, %s206
        %v208 = vld [vmem:[%s203] sm:$0xff]
        %v209 = vld [vmem:[%s1] sm:$0xff]
        %v210 = vld [vmem:[%s1 + $0x8] sm:$0xff]
        %v211 = vld [vmem:[%s1 + $0x10] sm:$0xff]
        %v212 = vld [vmem:[%s1 + $0x18] sm:$0xff]
        %v213 = vld [vmem:[%s1 + $0x20] sm:$0xff]
        %v214 = vld [vmem:[%s1 + $0x28] sm:$0xff]
        %v215 = vld [vmem:[%s1 + $0x30] sm:$0xff]
        %v216 = vld [vmem:[%s1 + $0x38] sm:$0xff]
        %v217 = vld [vmem:[%s1 + $0x40] sm:$0xff]
        %v218 = vld [vmem:[%s1 + $0x48] sm:$0xff]
        %v219 = vld [vmem:[%s1 + $0x50] sm:$0xff]
        %v220 = vld [vmem:[%s1 + $0x58] sm:$0xff]
        %v221 = vld [vmem:[%s1 + $0x60] sm:$0xff]
        %v222 = vld [vmem:[%s1 + $0x68] sm:$0xff]
        %v223 = vld [vmem:[%s1 + $0x70] sm:$0xff]
        %v224 = vld [vmem:[%s1 + $0x78] sm:$0xff]
        %vm225 = vcmask 261120
        %v227 = vsel %vm225, %v208, 0
        %v230 = vsel %vm225, %v209, 0
        %v233 = vsel %vm225, %v210, 0
        %v236 = vsel %vm225, %v211, 0
        %v239 = vsel %vm225, %v212, 0
        %v242 = vsel %vm225, %v213, 0
        %v245 = vsel %vm225, %v214, 0
        %v248 = vsel %vm225, %v215, 0
        %v251 = vsel %vm225, %v216, 0
        %v254 = vsel %vm225, %v217, 0
        %v257 = vsel %vm225, %v218, 0
        %v260 = vsel %vm225, %v219, 0
        %v263 = vsel %vm225, %v220, 0
        %v266 = vsel %vm225, %v221, 0
        %v269 = vsel %vm225, %v222, 0
        %v272 = vsel %vm225, %v223, 0
        %v275 = vsel %vm225, %v224, 0
        %277 = vmatprep.subr.mxu0 0.0
        %278 = vmatpush1.xpose.msra.mxu0 %v275
        %279 = vmatprep.subr.mxu0 0.0
        %280 = vmatpush1.xpose.msra.mxu0 %v272
        %281 = vmatprep.subr.mxu0 0.0
        %282 = vmatpush1.xpose.msra.mxu0 %v269
        %283 = vmatprep.subr.mxu0 0.0
        %284 = vmatpush1.xpose.msra.mxu0 %v266
        %285 = vmatprep.subr.mxu0 0.0
        %286 = vmatpush1.xpose.msra.mxu0 %v263
        %287 = vmatprep.subr.mxu0 0.0
        %288 = vmatpush1.xpose.msra.mxu0 %v260
        %289 = vmatprep.subr.mxu0 0.0
        %290 = vmatpush1.xpose.msra.mxu0 %v257
        %291 = vmatprep.subr.mxu0 0.0
        %292 = vmatpush1.xpose.msra.mxu0 %v254
        %293 = vmatprep.subr.mxu0 0.0
        %294 = vmatpush1.xpose.msra.mxu0 %v251
        %295 = vmatprep.subr.mxu0 0.0
        %296 = vmatpush1.xpose.msra.mxu0 %v248
        %297 = vmatprep.subr.mxu0 0.0
        %298 = vmatpush1.xpose.msra.mxu0 %v245
        %299 = vmatprep.subr.mxu0 0.0
        %300 = vmatpush1.xpose.msra.mxu0 %v242
        %301 = vmatprep.subr.mxu0 0.0
        %302 = vmatpush1.xpose.msra.mxu0 %v239
        %303 = vmatprep.subr.mxu0 0.0
        %304 = vmatpush1.xpose.msra.mxu0 %v236
        %305 = vmatprep.subr.mxu0 0.0
        %306 = vmatpush1.xpose.msra.mxu0 %v233
        %307 = vmatprep.subr.mxu0 0.0
        %308 = vmatpush1.xpose.msra.mxu0 %v230
        %309 = vmatprep.subr.mxu0 0.0
        %310 = vmatpush2.xpose.msra.mxu0 0.0
        %311 = vmatprep.subr.mxu0 0.0
        %312 = vmatpush2.xpose.msra.mxu0 0.0
        %313 = vmatprep.subr.mxu0 0.0
        %314 = vmatpush2.xpose.msra.mxu0 0.0
        %315 = vmatprep.subr.mxu0 0.0
        %316 = vmatpush2.xpose.msra.mxu0 0.0
        %317 = vmatprep.subr.mxu0 0.0
        %318 = vmatpush2.xpose.msra.mxu0 0.0
        %319 = vmatprep.subr.mxu0 0.0
        %320 = vmatpush2.xpose.msra.mxu0 0.0
        %321 = vmatprep.subr.mxu0 0.0
        %322 = vmatpush2.xpose.msra.mxu0 0.0
        %323 = vmatprep.subr.mxu0 0.0
        %324 = vmatpush2.xpose.msra.mxu0 0.0
        %325 = vmatprep.subr.mxu0 0.0
        %326 = vmatpush2.xpose.msra.mxu0 0.0
        %327 = vmatprep.subr.mxu0 0.0
        %328 = vmatpush2.xpose.msra.mxu0 0.0
        %329 = vmatprep.subr.mxu0 0.0
        %330 = vmatpush2.xpose.msra.mxu0 0.0
        %331 = vmatprep.subr.mxu0 0.0
        %332 = vmatpush2.xpose.msra.mxu0 0.0
        %333 = vmatprep.subr.mxu0 0.0
        %334 = vmatpush2.xpose.msra.mxu0 0.0
        %335 = vmatprep.subr.mxu0 0.0
        %336 = vmatpush2.xpose.msra.mxu0 0.0
        %337 = vmatprep.subr.mxu0 0.0
        %338 = vmatpush2.xpose.msra.mxu0 0.0
        %339 = vmatprep.subr.mxu0 0.0
        %340 = vmatpush2.xpose.msra.mxu0 0.0
        %341 = vmatprep.mubr.f32.mxu0 0.0
        %342 = vmatmul.mubr.f32.gmra.mxu0 %v227
        %v343 = vpop.f32.mrf.mxu0
        %v344 = vadd.f32 0.0, %v343
        %v345 = vpop.f32.mrf.mxu0
        %346 = vdwg.mxu0
        %v347 = vld [vmem:[%s207] sm:$0x1]
        %v348 = vld [vmem:[%s207 + $0x1] sm:$0x1]
        %v349 = vlaneseq
        %v350 = vshrl.u32 %v349, 7
        %v351 = vsub.s32 0, %v350
        %v352 = vrot.slane %v347, %v351
        %v353 = vmul.f32 %v352, %v344
        %v354 = vlaneseq
        %v355 = vshrl.u32 %v354, 7
        %v356 = vsub.s32 0, %v355
        %v357 = vrot.slane %v348, %v356
        %v358 = vadd.f32 %v353, %v357
        %v359 = vand.u32 2147483647, %v358
        %vm360 = vcmp.le.f32.partialorder %v359, 0.7853982
        %vm361 = vcmp.lt.s32.totalorder %v358, 0
        %v362 = vand.u32 %v358, 2139095040
        %v363 = vshrl.u32 %v362, 23
        %v364 = vsub.s32 %v363, 127
        %v365 = vand.u32 2147483647, %v358
        %v366 = vand.u32 %v365, 8388607
        %v367 = vor.u32 %v366, 8388608
        %v368 = vsub.s32 0, %v367
        %v369 = vadd.s32 %v364, 1
        %vm370 = vcmp.gt.s32.totalorder %v369, 0
        %v371 = vsel %vm370, %v369, 0
        %v372 = vshrl.u32 %v371, 5
        %v373 = vand.u32 %v371, 31
        %v374 = vsub.s32 32, %v373
        %v375 = vshrl.u32 683565275, %v374
        %v376 = vshll.u32 683565275, %v373
        %v377 = vshrl.u32 2475754826, %v374
        %v378 = vor.u32 %v376, %v377
        %v379 = vshll.u32 2475754826, %v373
        %v380 = vshrl.u32 2131351028, %v374
        %v381 = vor.u32 %v379, %v380
        %v382 = vshll.u32 2131351028, %v373
        %v383 = vshrl.u32 2102212464, %v374
        %v384 = vor.u32 %v382, %v383
        %v385 = vshll.u32 2102212464, %v373
        %v386 = vshrl.u32 920167782, %v374
        %v387 = vor.u32 %v385, %v386
        %v388 = vshll.u32 920167782, %v373
        %v389 = vshrl.u32 1326507024, %v374
        %v390 = vor.u32 %v388, %v389
        %vm391 = vcmp.lt.s32.totalorder %v372, 1
        %vm392 = vcmp.lt.s32.totalorder %v372, 2
        %vm393 = vcmp.lt.s32.totalorder %v372, 3
        %vm394 = vcmp.lt.s32.totalorder %v372, 4
        %v395 = vsel %vm391, %v375, %v378
        %v396 = vsel %vm394, %v384, 2102212464
        %v397 = vsel %vm393, %v381, %v396
        %v398 = vsel %vm392, %v395, %v397
        %v399 = vsel %vm391, %v378, %v381
        %v400 = vsel %vm394, %v387, 920167782
        %v401 = vsel %vm393, %v384, %v400
        %v402 = vsel %vm392, %v399, %v401
        %v403 = vsel %vm391, %v381, %v384
        %v404 = vsel %vm394, %v390, 1326507024
        %v405 = vsel %vm393, %v387, %v404
        %v406 = vsel %vm392, %v403, %v405
        %v407 = vshll.u32 %v367, 8
        %v408 = vmul.u32.u64.compose %v407, %v406
        %v409 = vextract.low.u32 %v408
        %v410 = vextract.high.u32 %v408
        %v411 = vmul.u32.u64.compose %v407, %v402
        %v412 = vextract.low.u32 %v411
        %v413 = vextract.high.u32 %v411
        %v414 = vmul.u32 %v407, %v398
        %v415 = vadd.s32 %v410, %v412
        %vm416 = vc.u32 %v410, %v412
        %v417 = vadd.s32 %v413, 1
        %v418 = vsel %vm416, %v417, %v413
        %v419 = vadd.s32 %v414, %v418
        %v420 = vadd.s32 %v419, 536870912
        %v421 = vshrl.u32 %v420, 30
        %v422 = vshll.u32 %v421, 30
        %v423 = vsub.s32 %v419, %v422
        %vm424 = vcmp.lt.s32.totalorder %v423, 0
        %v425 = vsub.s32 0, %v423
        %v426 = vsel %vm424, %v425, %v423
        %v427 = vclz %v426
        %v428 = vsub.s32 %v427, 2
        %vm429 = vcmp.gt.s32.totalorder 0, %v428
        %v430 = vsel %vm429, 0, %v428
        %v431 = vsub.s32 32, %v430
        %v432 = vshll.u32 %v423, %v430
        %v433 = vshrl.u32 %v415, %v431
        %v434 = vor.u32 %v432, %v433
        %v435 = vsub.s32 4294967266, %v430
        %v436 = vadd.s32 %v435, 127
        %v437 = vshll.u32 %v436, 23
        %v438 = vor.u32 4788187, %v437
        %v439 = vand.u32 2147483647, %v438
        %v441 = vcvt.s32.f32 %v434
        %v442 = vmul.f32 %v441, %v439
        %v443 = vxor.u32 %v442, 2147483648
        %v444 = vsel %vm361, %v443, %v442
        %v445 = vsub.s32 4, %v421
        %v446 = vsel %vm361, %v445, %v421
        %v447 = vsel %vm360, %v358, %v444
        %v448 = vsel %vm360, 0, %v446
        %v449 = vcosq.f32.pop %v447
        %v450 = vsinq.f32.pop %v447
        %vm451 = vweird.f32 %v358
        %v452 = vadd.s32 %v448, 3
        %v453 = vand.u32 %v452, 3
        %vm454 = vcmp.lt.s32.totalorder %v453, 2
        %vm455 = vcmp.eq.s32.totalorder %v453, 0
        %v456 = vxor.u32 %v450, 2147483648
        %v457 = vsel %vm455, %v449, %v456
        %vm458 = vcmp.eq.s32.totalorder %v453, 2
        %v459 = vxor.u32 %v449, 2147483648
        %v460 = vsel %vm458, %v459, %v450
        %v461 = vsel %vm454, %v457, %v460
        %v462 = vsel %vm451, nan, %v461
        %463 = vst [vmem:[%s196] sm:$0xff] %v462
        %s464 = sand.u32 %s114, 1
        %s465 = scalar_lea.sflag [#allocation3], %s464
        %s466 = sand.u32 %s114, 1
        %s467 = smul.addr %s466, 8
        %s468 = scalar_lea.vmem [#allocation2], %s467
        // Predicated region
        $region33: #{tpu_custom_call.1} parent=31 // pred_check
          %p469 = pneg %p124
        $region34: #{tpu_custom_call.1} parent=31 // pred_check_branch
          %471 = sbr.rel (%p469) target = $region36
        $region35: #{tpu_custom_call.1} parent=31 // pred_region
          %s473 = ssub.s32 128, 128
          %474 = vsyncadd %s465, %s473
          %s475 = sadd.s32 %s22, %s21
          %s476 = smul.addr %s475, 128
          %s477 = scalar_lea.hbm %s3, %s476
          %s479 = sshll.u32 %s468, 4
          %s480 = int_to_ptr.vmem [resolvable:$true] %s479
          %482 = dma.vmem_to_hbm [thread:$0]  %s480, 128, %s477, %s465
        $region36: #{tpu_custom_call.1} parent=31 // pred_fallthru
          _
      $region32: #{tpu_custom_call.1} parent=5 // pred_fallthru
        _
      %p483 = scmp.le.s32.totalorder 2, %s12
      // Predicated region
      $region37: #{tpu_custom_call.1} parent=5 // pred_check
        %p484 = pneg %p483
      $region38: #{tpu_custom_call.1} parent=5 // pred_check_branch
        %486 = sbr.rel (%p484) target = $region40
      $region39: #{tpu_custom_call.1} parent=5 // pred_region
        %s487 = ssub.s32 %s12, 2
        // Predicated region
        $region41: #{tpu_custom_call.1} parent=39 // pred_check
          %p488 = pneg %p130
        $region42: #{tpu_custom_call.1} parent=39 // pred_check_branch
          %490 = sbr.rel (%p488) target = $region44
        $region43: #{tpu_custom_call.1} parent=39 // pred_region
          %s491 = sand.u32 %s115, 1
          %s492 = scalar_lea.sflag [#allocation3], %s491
          %s493 = sand.u32 %s115, 1
          %s494 = smul.addr %s493, 8
          %s495 = scalar_lea.vmem [#allocation2], %s494
          %496 = dma.done %s492, 128
        $region44: #{tpu_custom_call.1} parent=39 // pred_fallthru
          _
      $region40: #{tpu_custom_call.1} parent=5 // pred_fallthru
        _
    $region6: #{tpu_custom_call.1} parent=1 // loop_footer
      %s16 = sadd.s32 1, %s12
    $region7: #{tpu_custom_call.1} parent=1 // loop_footer_branch
      %11 = sbr.rel target = $region3
    $region8: #{tpu_custom_call.1} parent=1 // loop_exit
      _
    %497 = vsyncpa [#allocation3], 1
    %s498 = scalar_lea.sflag [#allocation3], 1
    %499 = vsyncpa %s498, 1

</llo_original>
